<compile_context>
chip_gen: v5e
topology: v5e:2x2
jax: 0.10.0
libtpu: 0.0.40
codegen_flags: <defaults>
</compile_context>

<pallas_src>
import math

import jax
import jax.numpy as jnp
from jax.experimental import pallas as pl
from jax.experimental.pallas import tpu as pltpu


def _round_up(x: int, m: int) -> int:
    return ((x + m - 1) // m) * m


def _vmem_limit_bytes() -> int:
    """Scoped-VMEM limit to request: ~80% of physical per-core VMEM."""
    cap = 64 * 1024 * 1024  # conservative fallback (v7x-sized)
    try:
        info = pltpu.get_tpu_info()
        cap = int(getattr(info, "vmem_capacity_bytes", cap))
    except Exception:
        pass
    return int(cap * 0.8)


# ----------------------------- kernels --------------------------------------

def _mlp_fused_kernel(x_ref, w1_ref, b1_ref, w2_ref, b2_ref, o_ref):
    # Whole hidden dim in one step; weights are grid-invariant (DMA'd once).
    h = jnp.dot(x_ref[...], w1_ref[...], preferred_element_type=jnp.float32)
    h = jnp.maximum(h + b1_ref[...], 0.0).astype(w2_ref.dtype)     # ReLU (act())
    o_ref[...] = (
        jnp.dot(h, w2_ref[...], preferred_element_type=jnp.float32) + b2_ref[...]
    ).astype(o_ref.dtype)


def _mlp_htiled_kernel(x_ref, w1_ref, b1_ref, w2_ref, b2_ref, o_ref, acc_ref):
    # Reduction over H chunks (last grid axis); acc_ref is an f32 VMEM accumulator.
    k = pl.program_id(1)
    h = jnp.dot(x_ref[...], w1_ref[...], preferred_element_type=jnp.float32)
    h = jnp.maximum(h + b1_ref[...], 0.0).astype(w2_ref.dtype)
    part = jnp.dot(h, w2_ref[...], preferred_element_type=jnp.float32)

    @pl.when(k == 0)
    def _():
        acc_ref[...] = part + b2_ref[...]          # first step assigns (no memset)

    @pl.when(k > 0)
    def _():
        acc_ref[...] += part

    @pl.when(k == pl.num_programs(1) - 1)
    def _():
        o_ref[...] = acc_ref[...].astype(o_ref.dtype)


# ----------------------------- tiling ---------------------------------------

def _footprint_bytes(tile_m, tile_h, e_pad, in_isz, out_isz, fused):
    f = 2 * tile_m * e_pad * in_isz            # x tile (double-buffered)
    f += 2 * e_pad * tile_h * in_isz           # w1 chunk
    f += 2 * tile_h * e_pad * in_isz           # w2 chunk
    f += 2 * 8 * (tile_h + e_pad) * in_isz     # b1/b2 (sublane-padded)
    f += 2 * tile_m * e_pad * out_isz          # output tile
    f += tile_m * tile_h * (4 + in_isz)        # f32 hidden + recast copy
    if not fused:
        f += tile_m * e_pad * 4                # accumulator scratch
    return f


def _choose_tiles(M, e_pad, h_pad, in_isz, out_isz, budget,
                  tile_m_target=1024, tile_h_target=2048):
    sub = max(8, 32 // in_isz)                 # f32 -> 8, bf16 -> 16, fp8/int8 -> 32
    m_cap = _round_up(M, sub)

    def legal_tm(t):
        t = min(t, m_cap)
        return _round_up(max(t, 1), sub) if t < 256 else (t // 256) * 256

    tile_m = legal_tm(tile_m_target)
    # Keep >=2 M tiles when tiles are large so the parallel M axis can shard
    # across v7x's 2 TensorCores.
    if tile_m >= 512 and math.ceil(M / tile_m) == 1:
        tile_m = legal_tm(max(256, tile_m // 2))

    # Prefer the fused form (single H step: weights loaded once, no accumulator).
    tm = tile_m
    while tm >= sub:
        if _footprint_bytes(tm, h_pad, e_pad, in_isz, out_isz, True) <= budget:
            return tm, h_pad, True
        nxt = legal_tm(tm // 2)
        if nxt >= tm:
            break
        tm = nxt

    # Fallback: tile H (reduction axis last). tile_h divides padded H exactly.
    q = h_pad // 128
    divisors = [d for d in range(q, 0, -1) if q % d == 0]
    h_cands = [128 * d for d in divisors if 128 * d <= max(128, tile_h_target)]
    if not h_cands:
        h_cands = [128]
    tm = tile_m
    while True:
        for th in h_cands:
            if _footprint_bytes(tm, th, e_pad, in_isz, out_isz, False) <= budget:
                return tm, th, False
        nxt = legal_tm(tm // 2)
        if nxt >= tm:
            break
        tm = nxt
    return max(sub, 8), 128, False


# ----------------------------- wrapper ---------------------------------------

def prepare_mlp_params(w1, b1, w2, b2, *, compute_dtype=jnp.bfloat16):
    """One-time padding/cast of the weights (hoisted out of the per-call path).

    w1:(E,H) b1:(H,) w2:(H,E) b2:(E,) -- pre-transposed vs torch.nn.Linear.
    Zero padding is exact: padded E cols of x meet zero rows of w1; padded H
    cols give ReLU(0)=0 which meets zero rows of w2; padded outputs are sliced.
    """
    E, H = w1.shape
    e_pad, h_pad = _round_up(E, 128), _round_up(H, 128)
    cd = jnp.dtype(compute_dtype)
    w1p = jnp.pad(w1.astype(cd), ((0, e_pad - E), (0, h_pad - H)))
    b1p = jnp.pad(b1.astype(cd), (0, h_pad - H)).reshape(1, h_pad)
    w2p = jnp.pad(w2.astype(cd), ((0, h_pad - H), (0, e_pad - E)))
    b2p = jnp.pad(b2.astype(cd), (0, e_pad - E)).reshape(1, e_pad)
    return {"w1": w1p, "b1": b1p, "w2": w2p, "b2": b2p,
            "E": E, "H": H, "compute_dtype": cd}


def mlp_block_apply(x, params, *, tile_m=None, tile_h=None, vmem_limit_bytes=None):
    """x: (..., E) -> (..., E) using prepared params."""
    E = params["E"]
    cd = params["compute_dtype"]
    w1p, b1p, w2p, b2p = params["w1"], params["b1"], params["w2"], params["b2"]
    e_pad, h_pad = w1p.shape
    assert x.shape[-1] == E

    lead_shape = x.shape[:-1]
    M = int(math.prod(lead_shape)) if lead_shape else 1
    in_isz = cd.itemsize
    out_dtype = x.dtype
    out_isz = jnp.dtype(out_dtype).itemsize
    sub = max(8, 32 // in_isz)

    limit = int(vmem_limit_bytes) if vmem_limit_bytes is not None else _vmem_limit_bytes()
    budget = int(limit * 0.85)        # headroom for Mosaic internal scratch

    if tile_m is None or tile_h is None:
        tm_auto, th_auto, _ = _choose_tiles(M, e_pad, h_pad, in_isz, out_isz, budget)
        tile_m = tm_auto if tile_m is None else tile_m
        tile_h = th_auto if tile_h is None else tile_h

    tile_m = max(sub, _round_up(min(int(tile_m), _round_up(M, sub)), sub))
    tile_h = max(128, _round_up(min(int(tile_h), h_pad), 128))

    h_run = _round_up(h_pad, tile_h)          # exact multiple of tile_h
    if h_run != h_pad:                         # only when a forced tile_h doesn't divide
        w1p = jnp.pad(w1p, ((0, 0), (0, h_run - h_pad)))
        b1p = jnp.pad(b1p, ((0, 0), (0, h_run - h_pad)))
        w2p = jnp.pad(w2p, ((0, h_run - h_pad), (0, 0)))

    m_pad = _round_up(M, tile_m)
    x2 = x.reshape(M, E).astype(cd)
    if m_pad != M or e_pad != E:               # skip padding when already aligned
        x2 = jnp.pad(x2, ((0, m_pad - M), (0, e_pad - E)))

    fused = (tile_h == h_run)
    num_m_tiles = m_pad // tile_m

    if fused:
        grid = (num_m_tiles,)
        in_specs = [
            pl.BlockSpec((tile_m, e_pad), lambda i: (i, 0)),   # x rows
            pl.BlockSpec((e_pad, h_run), lambda i: (0, 0)),    # w1 (grid-invariant)
            pl.BlockSpec((1, h_run), lambda i: (0, 0)),        # b1
            pl.BlockSpec((h_run, e_pad), lambda i: (0, 0)),    # w2
            pl.BlockSpec((1, e_pad), lambda i: (0, 0)),        # b2
        ]
        out_specs = pl.BlockSpec((tile_m, e_pad), lambda i: (i, 0))
        scratch = []
        kernel = _mlp_fused_kernel
        dims = ("parallel",)
        weight_reads = 1
    else:
        grid = (num_m_tiles, h_run // tile_h)
        in_specs = [
            pl.BlockSpec((tile_m, e_pad), lambda i, k: (i, 0)),
            pl.BlockSpec((e_pad, tile_h), lambda i, k: (0, k)),
            pl.BlockSpec((1, tile_h), lambda i, k: (0, k)),
            pl.BlockSpec((tile_h, e_pad), lambda i, k: (k, 0)),
            pl.BlockSpec((1, e_pad), lambda i, k: (0, 0)),
        ]
        out_specs = pl.BlockSpec((tile_m, e_pad), lambda i, k: (i, 0))
        scratch = [pltpu.VMEM((tile_m, e_pad), jnp.float32)]
        kernel = _mlp_htiled_kernel
        dims = ("parallel", "arbitrary")
        weight_reads = num_m_tiles             # weights re-streamed per M tile

    cost = pl.CostEstimate(
        flops=4 * m_pad * e_pad * h_run,
        transcendentals=0,
        bytes_accessed=int(
            x2.size * in_isz
            + m_pad * e_pad * out_isz
            + weight_reads * (w1p.size + w2p.size + b1p.size) * in_isz
            + b2p.size * in_isz
        ),
    )

    out2 = pl.pallas_call(
        kernel,
        out_shape=jax.ShapeDtypeStruct((m_pad, e_pad), out_dtype),
        grid_spec=pltpu.PrefetchScalarGridSpec(
            num_scalar_prefetch=0,
            grid=grid,
            in_specs=in_specs,
            out_specs=out_specs,
            scratch_shapes=scratch,
        ),
        compiler_params=pltpu.CompilerParams(
            dimension_semantics=dims,
            vmem_limit_bytes=limit,
        ),
        cost_estimate=cost,
    )(x2, w1p, b1p, w2p, b2p)

    return out2[:M, :E].reshape(*lead_shape, E)


def mlp_block(x, w1, b1, w2, b2, *, compute_dtype=jnp.bfloat16, **kw):
    """Convenience wrapper (prep + apply). Prefer prepare_mlp_params once."""
    return mlp_block_apply(x, prepare_mlp_params(w1, b1, w2, b2,
                                                 compute_dtype=compute_dtype), **kw)


# ----------------------------- reference / tests -----------------------------

def _ref_mlp(x, w1, b1, w2, b2, compute_dtype):
    cd = jnp.dtype(compute_dtype)
    h = jnp.dot(x.astype(cd), w1.astype(cd), preferred_element_type=jnp.float32)
    h = jnp.maximum(h + b1.astype(cd).astype(jnp.float32), 0.0).astype(cd)
    o = jnp.dot(h, w2.astype(cd), preferred_element_type=jnp.float32)
    return (o + b2.astype(cd).astype(jnp.float32)).astype(x.dtype)


def init_params(key, embedding_dim, mlp_dim, dtype=jnp.float32):
    # Deterministic synthetic init (uniform, PyTorch-Linear-like fan_in bound).
    k1, k2, k3, k4 = jax.random.split(key, 4)
    bound1 = 1.0 / (embedding_dim ** 0.5)
    bound2 = 1.0 / (mlp_dim ** 0.5)
    w1 = jax.random.uniform(k1, (embedding_dim, mlp_dim), dtype, -bound1, bound1)
    b1 = jax.random.uniform(k2, (mlp_dim,), dtype, -bound1, bound1)
    w2 = jax.random.uniform(k3, (mlp_dim, embedding_dim), dtype, -bound2, bound2)
    b2 = jax.random.uniform(k4, (embedding_dim,), dtype, -bound2, bound2)
    return w1, b1, w2, b2


if __name__ == "__main__":
    key = jax.random.PRNGKey(0)
    k1, k2, k3, k4, k5, k6 = jax.random.split(key, 6)

    # Test 1: small shapes, f32 compute, auto tiles -> fused (single-H-step) path.
    B, N, E, H = 2, 8, 32, 64
    x = jax.random.normal(k1, (B, N, E), dtype=jnp.float32)
    w1, b1, w2, b2 = init_params(k2, E, H)
    params = prepare_mlp_params(w1, b1, w2, b2, compute_dtype=jnp.float32)
    out = jax.block_until_ready(mlp_block_apply(x, params))
    ref = _ref_mlp(x, w1, b1, w2, b2, jnp.float32)
    assert out.shape == (B, N, E)
    assert jnp.allclose(out, ref, atol=1e-4, rtol=1e-4), "mismatch (1: fused f32)"

    # Test 2: forced small tiles -> multi M tiles + H-tiled accumulator path.
    B2, N2, E2, H2 = 1, 16, 32, 256
    xb = jax.random.normal(k3, (B2, N2, E2), dtype=jnp.float32)
    p2 = init_params(k4, E2, H2)
    params2 = prepare_mlp_params(*p2, compute_dtype=jnp.float32)
    outb = jax.block_until_ready(mlp_block_apply(xb, params2, tile_m=8, tile_h=128))
    refb = _ref_mlp(xb, *p2, jnp.float32)
    assert jnp.allclose(outb, refb, atol=1e-4, rtol=1e-4), "mismatch (2: H-tiled f32)"

    # Test 3: default bf16 compute (MXU-native), auto tiles, fused path.
    B3, N3, E3, H3 = 2, 32, 256, 512
    xc = jax.random.normal(k5, (B3, N3, E3), dtype=jnp.float32)
    p3 = init_params(k6, E3, H3)
    params3 = prepare_mlp_params(*p3)  # compute_dtype=bf16
    outc = jax.block_until_ready(mlp_block_apply(xc, params3))
    refc = _ref_mlp(xc, *p3, jnp.bfloat16)
    assert outc.shape == (B3, N3, E3)
    assert jnp.allclose(outc, refc, atol=2e-2, rtol=2e-2), "mismatch (3: fused bf16)"

    print("KERNEL_OK")
</pallas_src>

<mosaic_0001>
module attributes {stable_mosaic.version = 11 : i64} {
  func.func @_mlp_fused_kernel(%arg0: i32, %arg1: memref<16x128xf32, #tpu.memory_space<vmem>>, %arg2: memref<128x128xf32, #tpu.memory_space<vmem>>, %arg3: memref<1x128xf32, #tpu.memory_space<vmem>>, %arg4: memref<128x128xf32, #tpu.memory_space<vmem>>, %arg5: memref<1x128xf32, #tpu.memory_space<vmem>>, %arg6: memref<16x128xf32, #tpu.memory_space<vmem>>) attributes {dimension_semantics = [#tpu.dimension_semantics<parallel>], iteration_bounds = array<i64: 1>, scalar_prefetch = 0 : i64, scratch_operands = 0 : i64, tpu.core_type = #tpu.core_type<tc>, window_params = [{transform_indices = @transform_0, window_bounds = array<i64: 16, 128>}, {pipeline_mode = #tpu.pipeline_mode<synchronous>, transform_indices = @transform_1, window_bounds = array<i64: 128, 128>}, {pipeline_mode = #tpu.pipeline_mode<synchronous>, transform_indices = @transform_2, window_bounds = array<i64: 1, 128>}, {pipeline_mode = #tpu.pipeline_mode<synchronous>, transform_indices = @transform_3, window_bounds = array<i64: 128, 128>}, {pipeline_mode = #tpu.pipeline_mode<synchronous>, transform_indices = @transform_4, window_bounds = array<i64: 1, 128>}, {transform_indices = @transform_5, window_bounds = array<i64: 16, 128>}]} {
    %c0 = arith.constant 0 : index
    %c0_0 = arith.constant 0 : index
    %0 = vector.load %arg1[%c0, %c0_0] : memref<16x128xf32, #tpu.memory_space<vmem>>, vector<16x128xf32>
    %c0_1 = arith.constant 0 : index
    %c0_2 = arith.constant 0 : index
    %1 = vector.load %arg2[%c0_1, %c0_2] : memref<128x128xf32, #tpu.memory_space<vmem>>, vector<128x128xf32>
    %cst = arith.constant dense<0.000000e+00> : vector<16x128xf32>
    %2 = tpu.matmul %0, %1, %cst {dimension_numbers = #tpu.dot_dimension_numbers<[1], [0], [0], [1], [0, 0, 1, 1], [], []>} : vector<16x128xf32>, vector<128x128xf32>, vector<16x128xf32> -> vector<16x128xf32>
    %c0_3 = arith.constant 0 : index
    %c0_4 = arith.constant 0 : index
    %3 = vector.load %arg3[%c0_3, %c0_4] : memref<1x128xf32, #tpu.memory_space<vmem>>, vector<1x128xf32>
    %4 = vector.broadcast %3 : vector<1x128xf32> to vector<16x128xf32>
    %5 = arith.addf %2, %4 : vector<16x128xf32>
    %cst_5 = arith.constant 0.000000e+00 : f32
    %6 = vector.broadcast %cst_5 : f32 to vector<16x128xf32>
    %7 = arith.maximumf %5, %6 : vector<16x128xf32>
    %c0_6 = arith.constant 0 : index
    %c0_7 = arith.constant 0 : index
    %8 = vector.load %arg4[%c0_6, %c0_7] : memref<128x128xf32, #tpu.memory_space<vmem>>, vector<128x128xf32>
    %cst_8 = arith.constant dense<0.000000e+00> : vector<16x128xf32>
    %9 = tpu.matmul %7, %8, %cst_8 {dimension_numbers = #tpu.dot_dimension_numbers<[1], [0], [0], [1], [0, 0, 1, 1], [], []>} : vector<16x128xf32>, vector<128x128xf32>, vector<16x128xf32> -> vector<16x128xf32>
    %c0_9 = arith.constant 0 : index
    %c0_10 = arith.constant 0 : index
    %10 = vector.load %arg5[%c0_9, %c0_10] : memref<1x128xf32, #tpu.memory_space<vmem>>, vector<1x128xf32>
    %11 = vector.broadcast %10 : vector<1x128xf32> to vector<16x128xf32>
    %12 = arith.addf %9, %11 : vector<16x128xf32>
    %c0_11 = arith.constant 0 : index
    %c0_12 = arith.constant 0 : index
    %13 = vector.load %arg6[%c0_11, %c0_12] : memref<16x128xf32, #tpu.memory_space<vmem>>, vector<16x128xf32>
    tpu.vector_store %arg6[%c0_11, %c0_12], %12 {strides = array<i32>} : memref<16x128xf32, #tpu.memory_space<vmem>>, vector<16x128xf32>,
    return
  }
  func.func @transform_0(%arg0: i32) -> (i32, i32) {
    %c0_i32 = arith.constant 0 : i32
    %c0_i32_0 = arith.constant 0 : i32
    return %arg0, %c0_i32 : i32, i32
  }
  func.func @transform_1(%arg0: i32) -> (i32, i32) {
    %c0_i32 = arith.constant 0 : i32
    %c0_i32_0 = arith.constant 0 : i32
    %c0_i32_1 = arith.constant 0 : i32
    return %c0_i32, %c0_i32_0 : i32, i32
  }
  func.func @transform_2(%arg0: i32) -> (i32, i32) {
    %c0_i32 = arith.constant 0 : i32
    %c0_i32_0 = arith.constant 0 : i32
    %c0_i32_1 = arith.constant 0 : i32
    return %c0_i32, %c0_i32_0 : i32, i32
  }
  func.func @transform_3(%arg0: i32) -> (i32, i32) {
    %c0_i32 = arith.constant 0 : i32
    %c0_i32_0 = arith.constant 0 : i32
    %c0_i32_1 = arith.constant 0 : i32
    return %c0_i32, %c0_i32_0 : i32, i32
  }
  func.func @transform_4(%arg0: i32) -> (i32, i32) {
    %c0_i32 = arith.constant 0 : i32
    %c0_i32_0 = arith.constant 0 : i32
    %c0_i32_1 = arith.constant 0 : i32
    return %c0_i32, %c0_i32_0 : i32, i32
  }
  func.func @transform_5(%arg0: i32) -> (i32, i32) {
    %c0_i32 = arith.constant 0 : i32
    %c0_i32_0 = arith.constant 0 : i32
    return %arg0, %c0_i32 : i32, i32
  }
}

</mosaic_0001>

<llo_original>
// kernel: tpu_custom_call.1
$region0: #{tpu_custom_call.1}
  #allocation0 [shape = 'u32[]', space=smem, size = 0x4, offset = 0x4, fixed_abs, tag = 'smem constant byte address 0x4 - core index']
  #allocation1 [shape = 'u32[72,128]{1,0:T(1,128)}', space=vmem, size = 0x9000, scoped, tag = 'internal scratch']
  %s0 = inlined_call_operand.hbm [shape: f32[16,128], index: 0, kind: input, shape index: {}]
  %s1 = inlined_call_operand.hbm [shape: f32[128,128], index: 1, kind: input, shape index: {}]
  %s2 = inlined_call_operand.vmem [shape: f32[1,128], index: 2, kind: input, shape index: {}]
  %s3 = inlined_call_operand.hbm [shape: f32[128,128], index: 3, kind: input, shape index: {}]
  %s4 = inlined_call_operand.vmem [shape: f32[1,128], index: 4, kind: input, shape index: {}]
  %s5 = inlined_call_operand.hbm [shape: f32[16,128], index: 5, kind: output, shape index: {}]
  %s6 = sld [smem:[#allocation0]]
  $region42: #{tpu_custom_call.1} parent=0
    _
  %s8 = ssub.s32 1, %s6
  %s9 = scalar_select 0, %s8, %s6
  $region1: #{tpu_custom_call.1} parent=0
    #allocation2 [shape = 'u8[8192]{0}', space=vmem, size = 0x2000, scoped, tag = 'input window, operand 0, single buffered']
    #allocation3 [shape = 's32[1]{0}', space=sflag, size = 0x4, scoped, tag = 'scoped memory for tpu_custom_call.1']
    #allocation4 [shape = 's32[1]{0}', space=sflag, size = 0x4, scoped, tag = 'scoped memory for tpu_custom_call.1']
    #allocation5 [shape = 'u8[65536]{0}', space=vmem, size = 0x10000, scoped, tag = 'input window, operand 1, single buffered']
    #allocation6 [shape = 's32[1]{0}', space=sflag, size = 0x4, scoped, tag = 'scoped memory for tpu_custom_call.1']
    #allocation7 [shape = 'u8[65536]{0}', space=vmem, size = 0x10000, scoped, tag = 'input window, operand 3, single buffered']
    #allocation8 [shape = 'u8[8192]{0}', space=vmem, size = 0x2000, scoped, tag = 'output window, operand 0, single buffered']
    %10 = vsyncpa [#allocation3], 0
    %11 = vsyncpa [#allocation6], 0
    %12 = vsyncpa [#allocation4], 0
    // Predicated region
    $region2: #{tpu_custom_call.1} parent=1 // pred_check
      _
    $region3: #{tpu_custom_call.1} parent=1 // pred_check_branch
      %14 = sbr.rel (0) target = $region5
    $region4: #{tpu_custom_call.1} parent=1 // pred_region
      %16 = vsyncadd [#allocation3], 0
      %s17 = sshll.u32 %s0, 4
      %s18 = int_to_ptr.hbm [resolvable:$true] %s17
      %s19 = sshll.u32 [#allocation2], 4
      %s20 = int_to_ptr.vmem [resolvable:$true] %s19
      %25 = dma.hbm_to_vmem [thread:$0]  %s18, 256, %s20, [#allocation3], 128, 128, 8
    $region5: #{tpu_custom_call.1} parent=1 // pred_fallthru
      _
    // Predicated region
    $region6: #{tpu_custom_call.1} parent=1 // pred_check
      _
    $region7: #{tpu_custom_call.1} parent=1 // pred_check_branch
      %27 = sbr.rel (0) target = $region9
    $region8: #{tpu_custom_call.1} parent=1 // pred_region
      %29 = vsyncadd [#allocation6], 0
      %s30 = sshll.u32 %s1, 4
      %s31 = int_to_ptr.hbm [resolvable:$true] %s30
      %s32 = sshll.u32 [#allocation5], 4
      %s33 = int_to_ptr.vmem [resolvable:$true] %s32
      %38 = dma.hbm_to_vmem [thread:$0]  %s31, 2048, %s33, [#allocation6], 128, 128, 8
    $region9: #{tpu_custom_call.1} parent=1 // pred_fallthru
      _
    // Predicated region
    $region10: #{tpu_custom_call.1} parent=1 // pred_check
      _
    $region11: #{tpu_custom_call.1} parent=1 // pred_check_branch
      %40 = sbr.rel (0) target = $region13
    $region12: #{tpu_custom_call.1} parent=1 // pred_region
      _
    $region13: #{tpu_custom_call.1} parent=1 // pred_fallthru
      _
    // Predicated region
    $region14: #{tpu_custom_call.1} parent=1 // pred_check
      _
    $region15: #{tpu_custom_call.1} parent=1 // pred_check_branch
      %42 = sbr.rel (0) target = $region17
    $region16: #{tpu_custom_call.1} parent=1 // pred_region
      %44 = vsyncadd [#allocation6], 0
      %s45 = sshll.u32 %s3, 4
      %s46 = int_to_ptr.hbm [resolvable:$true] %s45
      %s47 = sshll.u32 [#allocation7], 4
      %s48 = int_to_ptr.vmem [resolvable:$true] %s47
      %53 = dma.hbm_to_vmem [thread:$0]  %s46, 2048, %s48, [#allocation6], 128, 128, 8
    $region17: #{tpu_custom_call.1} parent=1 // pred_fallthru
      _
    // Predicated region
    $region18: #{tpu_custom_call.1} parent=1 // pred_check
      _
    $region19: #{tpu_custom_call.1} parent=1 // pred_check_branch
      %55 = sbr.rel (0) target = $region21
    $region20: #{tpu_custom_call.1} parent=1 // pred_region
      _
    $region21: #{tpu_custom_call.1} parent=1 // pred_fallthru
      _
    // Predicated region
    $region22: #{tpu_custom_call.1} parent=1 // pred_check
      _
    $region23: #{tpu_custom_call.1} parent=1 // pred_check_branch
      %57 = sbr.rel (0) target = $region25
    $region24: #{tpu_custom_call.1} parent=1 // pred_region
      %59 = dma.done [#allocation3], 256
    $region25: #{tpu_custom_call.1} parent=1 // pred_fallthru
      _
    // Predicated region
    $region26: #{tpu_custom_call.1} parent=1 // pred_check
      _
    $region27: #{tpu_custom_call.1} parent=1 // pred_check_branch
      %61 = sbr.rel (0) target = $region29
    $region28: #{tpu_custom_call.1} parent=1 // pred_region
      %63 = dma.done [#allocation6], 2048
    $region29: #{tpu_custom_call.1} parent=1 // pred_fallthru
      _
    // Predicated region
    $region30: #{tpu_custom_call.1} parent=1 // pred_check
      _
    $region31: #{tpu_custom_call.1} parent=1 // pred_check_branch
      %65 = sbr.rel (0) target = $region33
    $region32: #{tpu_custom_call.1} parent=1 // pred_region
      %67 = dma.done [#allocation6], 2048
    $region33: #{tpu_custom_call.1} parent=1 // pred_fallthru
      _
    %v68 = vld [vmem:[#allocation2] sm:$0xff]
    %v69 = vld [vmem:[#allocation2 + $0x8] sm:$0xff]
    %v70 = vld [vmem:[#allocation5] sm:$0xff]
    %v71 = vld [vmem:[#allocation5 + $0x8] sm:$0xff]
    %v72 = vld [vmem:[#allocation5 + $0x10] sm:$0xff]
    %v73 = vld [vmem:[#allocation5 + $0x18] sm:$0xff]
    %v74 = vld [vmem:[#allocation5 + $0x20] sm:$0xff]
    %v75 = vld [vmem:[#allocation5 + $0x28] sm:$0xff]
    %v76 = vld [vmem:[#allocation5 + $0x30] sm:$0xff]
    %v77 = vld [vmem:[#allocation5 + $0x38] sm:$0xff]
    %v78 = vld [vmem:[#allocation5 + $0x40] sm:$0xff]
    %v79 = vld [vmem:[#allocation5 + $0x48] sm:$0xff]
    %v80 = vld [vmem:[#allocation5 + $0x50] sm:$0xff]
    %v81 = vld [vmem:[#allocation5 + $0x58] sm:$0xff]
    %v82 = vld [vmem:[#allocation5 + $0x60] sm:$0xff]
    %v83 = vld [vmem:[#allocation5 + $0x68] sm:$0xff]
    %v84 = vld [vmem:[#allocation5 + $0x70] sm:$0xff]
    %v85 = vld [vmem:[#allocation5 + $0x78] sm:$0xff]
    %v86 = vld [vmem:[%s2] sm:$0x1]
    %v88 = vperm.slane %v86, 0
    %90 = vmatpush.msra.mxu0 %v85
    %91 = vmatpush.msra.mxu0 %v84
    %92 = vmatpush.msra.mxu0 %v83
    %93 = vmatpush.msra.mxu0 %v82
    %94 = vmatpush.msra.mxu0 %v81
    %95 = vmatpush.msra.mxu0 %v80
    %96 = vmatpush.msra.mxu0 %v79
    %97 = vmatpush.msra.mxu0 %v78
    %98 = vmatpush.msra.mxu0 %v77
    %99 = vmatpush.msra.mxu0 %v76
    %100 = vmatpush.msra.mxu0 %v75
    %101 = vmatpush.msra.mxu0 %v74
    %102 = vmatpush.msra.mxu0 %v73
    %103 = vmatpush.msra.mxu0 %v72
    %104 = vmatpush.msra.mxu0 %v71
    %105 = vmatpush.msra.mxu0 %v70
    %106 = vmatmul.f32.gmra.mxu0 %v68
    %v107 = vpop.f32.mrf.mxu0
    %v108 = vadd.f32 %v88, %v107
    %109 = vmatmul.f32.gmra.mxu0 %v69
    %v110 = vpop.f32.mrf.mxu0
    %v111 = vadd.f32 %v88, %v110
    %112 = vdwg.mxu0
    %v113 = vmax.f32 %v108, 0.0
    %v114 = vmax.f32 %v111, 0.0
    %v115 = vld [vmem:[#allocation7] sm:$0xff]
    %v116 = vld [vmem:[#allocation7 + $0x8] sm:$0xff]
    %v117 = vld [vmem:[#allocation7 + $0x10] sm:$0xff]
    %v118 = vld [vmem:[#allocation7 + $0x18] sm:$0xff]
    %v119 = vld [vmem:[#allocation7 + $0x20] sm:$0xff]
    %v120 = vld [vmem:[#allocation7 + $0x28] sm:$0xff]
    %v121 = vld [vmem:[#allocation7 + $0x30] sm:$0xff]
    %v122 = vld [vmem:[#allocation7 + $0x38] sm:$0xff]
    %v123 = vld [vmem:[#allocation7 + $0x40] sm:$0xff]
    %v124 = vld [vmem:[#allocation7 + $0x48] sm:$0xff]
    %v125 = vld [vmem:[#allocation7 + $0x50] sm:$0xff]
    %v126 = vld [vmem:[#allocation7 + $0x58] sm:$0xff]
    %v127 = vld [vmem:[#allocation7 + $0x60] sm:$0xff]
    %v128 = vld [vmem:[#allocation7 + $0x68] sm:$0xff]
    %v129 = vld [vmem:[#allocation7 + $0x70] sm:$0xff]
    %v130 = vld [vmem:[#allocation7 + $0x78] sm:$0xff]
    %v131 = vld [vmem:[%s4] sm:$0x1]
    %v133 = vperm.slane %v131, 0
    %135 = vmatpush.msra.mxu0 %v130
    %136 = vmatpush.msra.mxu0 %v129
    %137 = vmatpush.msra.mxu0 %v128
    %138 = vmatpush.msra.mxu0 %v127
    %139 = vmatpush.msra.mxu0 %v126
    %140 = vmatpush.msra.mxu0 %v125
    %141 = vmatpush.msra.mxu0 %v124
    %142 = vmatpush.msra.mxu0 %v123
    %143 = vmatpush.msra.mxu0 %v122
    %144 = vmatpush.msra.mxu0 %v121
    %145 = vmatpush.msra.mxu0 %v120
    %146 = vmatpush.msra.mxu0 %v119
    %147 = vmatpush.msra.mxu0 %v118
    %148 = vmatpush.msra.mxu0 %v117
    %149 = vmatpush.msra.mxu0 %v116
    %150 = vmatpush.msra.mxu0 %v115
    %151 = vmatmul.f32.gmra.mxu0 %v113
    %v152 = vpop.f32.mrf.mxu0
    %v153 = vadd.f32 %v133, %v152
    %154 = vmatmul.f32.gmra.mxu0 %v114
    %v155 = vpop.f32.mrf.mxu0
    %v156 = vadd.f32 %v133, %v155
    %157 = vdwg.mxu0
    %158 = vst [vmem:[#allocation8] sm:$0xff] %v153
    %159 = vst [vmem:[#allocation8 + $0x8] sm:$0xff] %v156
    // Predicated region
    $region34: #{tpu_custom_call.1} parent=1 // pred_check
      _
    $region35: #{tpu_custom_call.1} parent=1 // pred_check_branch
      %161 = sbr.rel (0) target = $region37
    $region36: #{tpu_custom_call.1} parent=1 // pred_region
      %163 = vsyncadd [#allocation4], 0
      %s164 = sshll.u32 [#allocation8], 4
      %s165 = int_to_ptr.vmem [resolvable:$true] %s164
      %s166 = sshll.u32 %s5, 4
      %s167 = int_to_ptr.hbm [resolvable:$true] %s166
      %172 = dma.vmem_to_hbm [thread:$0]  %s165, 256, %s167, [#allocation4], 128, 128, 8
    $region37: #{tpu_custom_call.1} parent=1 // pred_fallthru
      _
    // Predicated region
    $region38: #{tpu_custom_call.1} parent=1 // pred_check
      _
    $region39: #{tpu_custom_call.1} parent=1 // pred_check_branch
      %174 = sbr.rel (0) target = $region41
    $region40: #{tpu_custom_call.1} parent=1 // pred_region
      %176 = dma.done [#allocation4], 256
    $region41: #{tpu_custom_call.1} parent=1 // pred_fallthru
      _
    %177 = vsyncpa [#allocation3], 1
    %178 = vsyncpa [#allocation6], 1
    %179 = vsyncpa [#allocation4], 1

</llo_original>
